<compile_context>
chip_gen: v5e
topology: v5e:2x2
jax: 0.10.0
libtpu: 0.0.40
codegen_flags: <defaults>
</compile_context>

<pallas_src>
from functools import partial

import jax
import jax.numpy as jnp
from jax.experimental import pallas as pl
from jax.experimental.pallas import tpu as pltpu


def _round_up(a: int, b: int) -> int:
    return (a + b - 1) // b * b


def _gelu_tanh(x):
    # PyTorch "gelu_pytorch_tanh" (tanh approximation), computed in f32.
    # x + 0.044715*x^3 == x * (1 + 0.044715*x^2)  (one fewer vmul).
    c = 0.7978845608028654  # sqrt(2/pi)
    return 0.5 * x * (1.0 + jnp.tanh(c * x * (1.0 + 0.044715 * x * x)))


def siglip_mlp_kernel(x_ref, w1_ref, b1_ref, w2_ref, b2_ref, o_ref, acc_ref,
                      *, chunks):
    """One row tile: chunked over I, f32 accumulation in VMEM scratch.

    x_ref:  (tm, H)   bf16, pipelined row tile
    w1_ref: (H, I)    bf16, whole-resident VMEM
    b1_ref: (1, I)    f32,  whole-resident VMEM
    w2_ref: (I, H)    bf16, whole-resident VMEM
    b2_ref: (1, H)    f32,  whole-resident VMEM
    o_ref:  (tm, H)   out dtype
    acc_ref:(tm, H)   f32 scratch accumulator
    """
    x = x_ref[...]
    acc_ref[...] = jnp.zeros_like(acc_ref)

    # Static, fully-unrolled chunk loop (n_chunks is small: I/tk <= ~8).
    # All slices are static -> zero-cost ref views, no dynamic lane indexing.
    for off, size in chunks:
        w1c = w1_ref[:, off:off + size]                 # (H, tk)
        b1c = b1_ref[:, off:off + size]                 # (1, tk)
        h = jnp.dot(x, w1c, preferred_element_type=jnp.float32) + b1c
        g = _gelu_tanh(h)                               # f32 (tm, tk)
        # fc2 partial: accumulate straight into the f32 scratch (MRB-friendly).
        acc_ref[...] += jnp.dot(g.astype(w2_ref.dtype),
                                w2_ref[off:off + size, :],
                                preferred_element_type=jnp.float32)

    o_ref[...] = (acc_ref[...] + b2_ref[...]).astype(o_ref.dtype)


def siglip_mlp(x, w1, b1, w2, b2, *, tm=512, tk=1024,
               compute_dtype=jnp.bfloat16, out_dtype=None):
    """x: [B, S, H]; w1: [H, I]; b1: [I]; w2: [I, H]; b2: [H].

    Weights should already be stored in `compute_dtype` (cast once at model
    load); the wrapper only casts if they are not.
    """
    B, S, H = x.shape
    I = w1.shape[1]
    out_dtype = x.dtype if out_dtype is None else out_dtype
    M = B * S

    # Cast activations to the compute dtype first (single cheap pass); no
    # host-side row padding: the trailing partial row tile is handled by the
    # Pallas grid (masked output writes).
    xc = x.reshape(M, H)
    if xc.dtype != compute_dtype:
        xc = xc.astype(compute_dtype)
    w1c = w1 if w1.dtype == compute_dtype else w1.astype(compute_dtype)
    w2c = w2 if w2.dtype == compute_dtype else w2.astype(compute_dtype)
    b1_2d = b1.reshape(1, I).astype(jnp.float32)
    b2_2d = b2.reshape(1, H).astype(jnp.float32)

    # --- Hardware-aware parameters -------------------------------------
    try:
        vmem_cap = int(pltpu.get_tpu_info().vmem_capacity_bytes)
    except Exception:
        vmem_cap = 64 << 20  # conservative (v7x-like) fallback

    # Row tile: as large as tm but never larger than needed; multiple of 8.
    tm_eff = min(tm, _round_up(M, 8))
    steps = -(-M // tm_eff)
    # Megacore balance (64-MiB parts have 2 TensorCores): avoid an odd step
    # count > 1 so ("parallel",) splits the row grid evenly across cores.
    if vmem_cap <= (64 << 20) and steps > 1 and steps % 2 == 1:
        tm_eff = min(tm_eff, _round_up(-(-M // (steps + 1)), 8))
        steps = -(-M // tm_eff)

    # Intermediate (I) chunk size: prefer a multiple of 128 (lane-aligned
    # w1 column slices); remainder chunk handled with a static tail slice.
    tk_eff = min(tk, I)
    if tk_eff >= 128:
        tk_eff = (tk_eff // 128) * 128
    else:
        tk_eff = max(8, (tk_eff // 8) * 8)
    chunks = []
    off = 0
    while off < I:
        size = min(tk_eff, I - off)
        chunks.append((off, size))
        off += size

    # --- VMEM budget (generation-gated clamp) ---------------------------
    csz = jnp.dtype(compute_dtype).itemsize
    osz = jnp.dtype(out_dtype).itemsize
    need = ((H * I + I * H) * csz            # resident weights (single copy)
            + (I + H) * 4 * 8                # f32 biases (sublane-padded)
            + 2 * tm_eff * H * csz           # double-buffered x row tiles
            + 2 * tm_eff * H * osz           # double-buffered out tiles
            + tm_eff * H * 4                 # f32 accumulator scratch
            + 4 * tm_eff * tk_eff * 4)       # h/g chunk slabs + temps (generous)
    vmem_limit = int(1.25 * need) + (6 << 20)
    if vmem_cap >= (128 << 20):
        cap = 100 << 20                      # v5e / v6e: plenty of physical VMEM
    else:
        cap = max(40 << 20, vmem_cap - (12 << 20))   # v7x: leave Mosaic headroom
    vmem_limit = max(32 << 20, min(vmem_limit, cap))

    cost = pl.CostEstimate(
        flops=4 * M * H * I,                 # fc1 + fc2 MACs
        transcendentals=M * I,               # tanh per intermediate element
        bytes_accessed=(M * H * csz + 2 * H * I * csz
                        + (I + H) * 4 + M * H * osz),
    )

    weight_spec = pl.BlockSpec(memory_space=pltpu.MemorySpace.VMEM)

    out2d = pl.pallas_call(
        partial(siglip_mlp_kernel, chunks=tuple(chunks)),
        out_shape=jax.ShapeDtypeStruct((M, H), out_dtype),
        grid=(steps,),
        in_specs=[
            pl.BlockSpec((tm_eff, H), lambda i: (i, 0)),  # x row tile (pipelined)
            weight_spec,   # fc1 weight: whole, resident, single copy
            weight_spec,   # fc1 bias (f32)
            weight_spec,   # fc2 weight
            weight_spec,   # fc2 bias (f32)
        ],
        out_specs=pl.BlockSpec((tm_eff, H), lambda i: (i, 0)),
        scratch_shapes=[pltpu.VMEM((tm_eff, H), jnp.float32)],
        compiler_params=pltpu.CompilerParams(
            dimension_semantics=("parallel",),
            vmem_limit_bytes=vmem_limit,
        ),
        cost_estimate=cost,
    )(xc, w1c, b1_2d, w2c, b2_2d)

    return out2d.reshape(B, S, H)


def reference_mlp(x, w1, b1, w2, b2, compute_dtype=jnp.bfloat16):
    # Mirrors the kernel's numerics: bf16 operands, f32 accumulation.
    B, S, H = x.shape
    xc = x.reshape(-1, H).astype(compute_dtype)
    w1c = w1.astype(compute_dtype)
    w2c = w2.astype(compute_dtype)
    h = jnp.dot(xc, w1c, preferred_element_type=jnp.float32) + b1.astype(jnp.float32)
    g = _gelu_tanh(h)
    out = (jnp.dot(g.astype(compute_dtype), w2c, preferred_element_type=jnp.float32)
           + b2.astype(jnp.float32))
    return out.astype(x.dtype).reshape(B, S, w2.shape[-1])


if __name__ == "__main__":
    # Small config consistent with a SiglipVisionConfig-style MLP.
    # seq=9 makes batch*seq (=18) a non-multiple of the row tile to exercise
    # the trailing partial-block (masked write) path.
    batch, seq = 2, 9
    hidden_size = 128
    intermediate_size = 512

    key = jax.random.PRNGKey(0)
    kx, k1, kb1, k2, kb2 = jax.random.split(key, 5)

    x = jax.random.normal(kx, (batch, seq, hidden_size), dtype=jnp.float32)
    w1 = jax.random.normal(k1, (hidden_size, intermediate_size), jnp.float32) * 0.05
    b1 = jax.random.normal(kb1, (intermediate_size,), jnp.float32) * 0.05
    w2 = jax.random.normal(k2, (intermediate_size, hidden_size), jnp.float32) * 0.05
    b2 = jax.random.normal(kb2, (hidden_size,), jnp.float32) * 0.05

    # Cast weights once "at model load" so the per-call path does no casting.
    w1_c = w1.astype(jnp.bfloat16)
    w2_c = w2.astype(jnp.bfloat16)

    out = siglip_mlp(x, w1_c, b1, w2_c, b2)
    out = jax.block_until_ready(out)

    ref = reference_mlp(x, w1_c, b1, w2_c, b2)
    assert out.shape == (batch, seq, hidden_size)
    max_err = float(jnp.max(jnp.abs(out - ref)))
    assert jnp.allclose(out, ref, atol=2e-2, rtol=2e-2), (
        f"mismatch vs reference (max abs err={max_err})")

    print("KERNEL_OK")
</pallas_src>

<mosaic_0001>
module attributes {stable_mosaic.version = 11 : i64} {
  func.func @siglip_mlp_kernel(%arg0: i32, %arg1: memref<24x128xbf16, #tpu.memory_space<vmem>>, %arg2: memref<128x512xbf16, #tpu.memory_space<vmem>>, %arg3: memref<1x512xf32, #tpu.memory_space<vmem>>, %arg4: memref<512x128xbf16, #tpu.memory_space<vmem>>, %arg5: memref<1x128xf32, #tpu.memory_space<vmem>>, %arg6: memref<24x128xf32, #tpu.memory_space<vmem>>, %arg7: memref<24x128xf32, #tpu.memory_space<vmem>>) attributes {dimension_semantics = [#tpu.dimension_semantics<parallel>], iteration_bounds = array<i64: 1>, scalar_prefetch = 0 : i64, scratch_operands = 1 : i64, tpu.core_type = #tpu.core_type<tc>, window_params = [{transform_indices = @transform_0, window_bounds = array<i64: 24, 128>}, {pipeline_mode = #tpu.pipeline_mode<synchronous>, transform_indices = @transform_1, window_bounds = array<i64: 128, 512>}, {pipeline_mode = #tpu.pipeline_mode<synchronous>, transform_indices = @transform_2, window_bounds = array<i64: 1, 512>}, {pipeline_mode = #tpu.pipeline_mode<synchronous>, transform_indices = @transform_3, window_bounds = array<i64: 512, 128>}, {pipeline_mode = #tpu.pipeline_mode<synchronous>, transform_indices = @transform_4, window_bounds = array<i64: 1, 128>}, {transform_indices = @transform_5, window_bounds = array<i64: 24, 128>}]} {
    %c0 = arith.constant 0 : index
    %c0_0 = arith.constant 0 : index
    %0 = vector.load %arg1[%c0, %c0_0] : memref<24x128xbf16, #tpu.memory_space<vmem>>, vector<24x128xbf16>
    %cst = arith.constant 0.000000e+00 : f32
    %1 = vector.broadcast %cst : f32 to vector<24x128xf32>
    %c0_1 = arith.constant 0 : index
    %c0_2 = arith.constant 0 : index
    %2 = vector.load %arg7[%c0_1, %c0_2] : memref<24x128xf32, #tpu.memory_space<vmem>>, vector<24x128xf32>
    tpu.vector_store %arg7[%c0_1, %c0_2], %1 {strides = array<i32>} : memref<24x128xf32, #tpu.memory_space<vmem>>, vector<24x128xf32>,
    %c0_3 = arith.constant 0 : index
    %c0_4 = arith.constant 0 : index
    %3 = vector.load %arg2[%c0_3, %c0_4] : memref<128x512xbf16, #tpu.memory_space<vmem>>, vector<128x512xbf16>
    %c0_5 = arith.constant 0 : index
    %c0_6 = arith.constant 0 : index
    %4 = vector.load %arg3[%c0_5, %c0_6] : memref<1x512xf32, #tpu.memory_space<vmem>>, vector<1x512xf32>
    %cst_7 = arith.constant dense<0.000000e+00> : vector<24x512xf32>
    %5 = tpu.matmul %0, %3, %cst_7 {dimension_numbers = #tpu.dot_dimension_numbers<[1], [0], [0], [1], [0, 0, 1, 1], [], []>} : vector<24x128xbf16>, vector<128x512xbf16>, vector<24x512xf32> -> vector<24x512xf32>
    %6 = vector.broadcast %4 : vector<1x512xf32> to vector<24x512xf32>
    %7 = arith.addf %5, %6 : vector<24x512xf32>
    %cst_8 = arith.constant 5.000000e-01 : f32
    %8 = vector.broadcast %cst_8 : f32 to vector<24x512xf32>
    %9 = arith.mulf %8, %7 : vector<24x512xf32>
    %cst_9 = arith.constant 0.797884583 : f32
    %10 = vector.broadcast %cst_9 : f32 to vector<24x512xf32>
    %11 = arith.mulf %10, %7 : vector<24x512xf32>
    %cst_10 = arith.constant 4.471500e-02 : f32
    %12 = vector.broadcast %cst_10 : f32 to vector<24x512xf32>
    %13 = arith.mulf %12, %7 : vector<24x512xf32>
    %14 = arith.mulf %13, %7 : vector<24x512xf32>
    %cst_11 = arith.constant 1.000000e+00 : f32
    %15 = vector.broadcast %cst_11 : f32 to vector<24x512xf32>
    %16 = arith.addf %15, %14 : vector<24x512xf32>
    %17 = arith.mulf %11, %16 : vector<24x512xf32>
    %18 = math.tanh %17 : vector<24x512xf32>
    %cst_12 = arith.constant 1.000000e+00 : f32
    %19 = vector.broadcast %cst_12 : f32 to vector<24x512xf32>
    %20 = arith.addf %19, %18 : vector<24x512xf32>
    %21 = arith.mulf %9, %20 : vector<24x512xf32>
    %c0_13 = arith.constant 0 : index
    %c0_14 = arith.constant 0 : index
    %22 = vector.load %arg7[%c0_13, %c0_14] : memref<24x128xf32, #tpu.memory_space<vmem>>, vector<24x128xf32>
    %23 = arith.truncf %21 : vector<24x512xf32> to vector<24x512xbf16>
    %c0_15 = arith.constant 0 : index
    %c0_16 = arith.constant 0 : index
    %24 = vector.load %arg4[%c0_15, %c0_16] : memref<512x128xbf16, #tpu.memory_space<vmem>>, vector<512x128xbf16>
    %cst_17 = arith.constant dense<0.000000e+00> : vector<24x128xf32>
    %25 = tpu.matmul %23, %24, %cst_17 {dimension_numbers = #tpu.dot_dimension_numbers<[1], [0], [0], [1], [0, 0, 1, 1], [], []>} : vector<24x512xbf16>, vector<512x128xbf16>, vector<24x128xf32> -> vector<24x128xf32>
    %26 = arith.addf %22, %25 : vector<24x128xf32>
    %c0_18 = arith.constant 0 : index
    %c0_19 = arith.constant 0 : index
    %27 = vector.load %arg7[%c0_18, %c0_19] : memref<24x128xf32, #tpu.memory_space<vmem>>, vector<24x128xf32>
    tpu.vector_store %arg7[%c0_18, %c0_19], %26 {strides = array<i32>} : memref<24x128xf32, #tpu.memory_space<vmem>>, vector<24x128xf32>,
    %c0_20 = arith.constant 0 : index
    %c0_21 = arith.constant 0 : index
    %28 = vector.load %arg7[%c0_20, %c0_21] : memref<24x128xf32, #tpu.memory_space<vmem>>, vector<24x128xf32>
    %c0_22 = arith.constant 0 : index
    %c0_23 = arith.constant 0 : index
    %29 = vector.load %arg5[%c0_22, %c0_23] : memref<1x128xf32, #tpu.memory_space<vmem>>, vector<1x128xf32>
    %30 = vector.broadcast %29 : vector<1x128xf32> to vector<24x128xf32>
    %31 = arith.addf %28, %30 : vector<24x128xf32>
    %c0_24 = arith.constant 0 : index
    %c0_25 = arith.constant 0 : index
    %32 = vector.load %arg6[%c0_24, %c0_25] : memref<24x128xf32, #tpu.memory_space<vmem>>, vector<24x128xf32>
    tpu.vector_store %arg6[%c0_24, %c0_25], %31 {strides = array<i32>} : memref<24x128xf32, #tpu.memory_space<vmem>>, vector<24x128xf32>,
    return
  }
  func.func @transform_0(%arg0: i32) -> (i32, i32) {
    %c0_i32 = arith.constant 0 : i32
    %c0_i32_0 = arith.constant 0 : i32
    return %arg0, %c0_i32 : i32, i32
  }
  func.func @transform_1(%arg0: i32) -> (i32, i32) {
    %c0_i32 = arith.constant 0 : i32
    %c0_i32_0 = arith.constant 0 : i32
    %c0_i32_1 = arith.constant 0 : i32
    return %c0_i32, %c0_i32_0 : i32, i32
  }
  func.func @transform_2(%arg0: i32) -> (i32, i32) {
    %c0_i32 = arith.constant 0 : i32
    %c0_i32_0 = arith.constant 0 : i32
    %c0_i32_1 = arith.constant 0 : i32
    return %c0_i32, %c0_i32_0 : i32, i32
  }
  func.func @transform_3(%arg0: i32) -> (i32, i32) {
    %c0_i32 = arith.constant 0 : i32
    %c0_i32_0 = arith.constant 0 : i32
    %c0_i32_1 = arith.constant 0 : i32
    return %c0_i32, %c0_i32_0 : i32, i32
  }
  func.func @transform_4(%arg0: i32) -> (i32, i32) {
    %c0_i32 = arith.constant 0 : i32
    %c0_i32_0 = arith.constant 0 : i32
    %c0_i32_1 = arith.constant 0 : i32
    return %c0_i32, %c0_i32_0 : i32, i32
  }
  func.func @transform_5(%arg0: i32) -> (i32, i32) {
    %c0_i32 = arith.constant 0 : i32
    %c0_i32_0 = arith.constant 0 : i32
    return %arg0, %c0_i32 : i32, i32
  }
}

</mosaic_0001>

<llo_original>
// kernel: tpu_custom_call.1
$region0: #{tpu_custom_call.1}
  #allocation0 [shape = 'u32[]', space=smem, size = 0x4, offset = 0x4, fixed_abs, tag = 'smem constant byte address 0x4 - core index']
  #allocation1 [shape = 'u32[72,128]{1,0:T(1,128)}', space=vmem, size = 0x9000, scoped, tag = 'internal scratch']
  #allocation2 [shape = 'f32[24,128]{1,0:T(8,128)}', space=vmem, size = 0x3000, scoped, tag = 'scratch operand']
  %s0 = inlined_call_operand.hbm [shape: bf16[18,128], index: 0, kind: input, shape index: {}]
  %s1 = inlined_call_operand.hbm [shape: bf16[128,512], index: 1, kind: input, shape index: {}]
  %s2 = inlined_call_operand.hbm [shape: f32[1,512], index: 2, kind: input, shape index: {}]
  %s3 = inlined_call_operand.hbm [shape: bf16[512,128], index: 3, kind: input, shape index: {}]
  %s4 = inlined_call_operand.vmem [shape: f32[1,128], index: 4, kind: input, shape index: {}]
  %s5 = inlined_call_operand.hbm [shape: f32[18,128], index: 5, kind: output, shape index: {}]
  %s6 = sld [smem:[#allocation0]]
  $region46: #{tpu_custom_call.1} parent=0
    _
  %s8 = ssub.s32 1, %s6
  %s9 = scalar_select 0, %s8, %s6
  $region1: #{tpu_custom_call.1} parent=0
    #allocation3 [shape = 'u8[6144]{0}', space=vmem, size = 0x1800, scoped, tag = 'input window, operand 0, single buffered']
    #allocation4 [shape = 's32[1]{0}', space=sflag, size = 0x4, scoped, tag = 'scoped memory for tpu_custom_call.1']
    #allocation5 [shape = 's32[1]{0}', space=sflag, size = 0x4, scoped, tag = 'scoped memory for tpu_custom_call.1']
    #allocation6 [shape = 'u8[131072]{0}', space=vmem, size = 0x20000, scoped, tag = 'input window, operand 1, single buffered']
    #allocation7 [shape = 's32[1]{0}', space=sflag, size = 0x4, scoped, tag = 'scoped memory for tpu_custom_call.1']
    #allocation8 [shape = 'u8[2048]{0}', space=vmem, size = 0x800, scoped, tag = 'input window, operand 2, single buffered']
    #allocation9 [shape = 'u8[131072]{0}', space=vmem, size = 0x20000, scoped, tag = 'input window, operand 3, single buffered']
    #allocation10 [shape = 's32[1]{0}', space=sflag, size = 0x4, scoped, tag = 'scoped memory for tpu_custom_call.1']
    #allocation11 [shape = 'u8[12288]{0}', space=vmem, size = 0x3000, scoped, tag = 'output window, operand 0, single buffered']
    %10 = vsyncpa [#allocation4], 0
    %11 = vsyncpa [#allocation7], 0
    %12 = vsyncpa [#allocation10], 0
    %13 = vsyncpa [#allocation5], 0
    // Predicated region
    $region2: #{tpu_custom_call.1} parent=1 // pred_check
      _
    $region3: #{tpu_custom_call.1} parent=1 // pred_check_branch
      %15 = sbr.rel (0) target = $region5
    $region4: #{tpu_custom_call.1} parent=1 // pred_region
      %17 = vsyncadd [#allocation4], 0
      %s18 = sshll.u32 %s0, 4
      %s19 = int_to_ptr.hbm [resolvable:$true] %s18
      %s20 = sshll.u32 [#allocation3], 4
      %s21 = int_to_ptr.vmem [resolvable:$true] %s20
      %26 = dma.hbm_to_vmem [thread:$0]  %s19, 192, %s21, [#allocation4], 64, 64, 4
    $region5: #{tpu_custom_call.1} parent=1 // pred_fallthru
      _
    // Predicated region
    $region6: #{tpu_custom_call.1} parent=1 // pred_check
      _
    $region7: #{tpu_custom_call.1} parent=1 // pred_check_branch
      %28 = sbr.rel (0) target = $region9
    $region8: #{tpu_custom_call.1} parent=1 // pred_region
      %30 = vsyncadd [#allocation7], 0
      %s31 = sshll.u32 %s1, 4
      %s32 = int_to_ptr.hbm [resolvable:$true] %s31
      %s33 = sshll.u32 [#allocation6], 4
      %s34 = int_to_ptr.vmem [resolvable:$true] %s33
      %39 = dma.hbm_to_vmem [thread:$0]  %s32, 4096, %s34, [#allocation7], 256, 256, 16
    $region9: #{tpu_custom_call.1} parent=1 // pred_fallthru
      _
    // Predicated region
    $region10: #{tpu_custom_call.1} parent=1 // pred_check
      _
    $region11: #{tpu_custom_call.1} parent=1 // pred_check_branch
      %41 = sbr.rel (0) target = $region13
    $region12: #{tpu_custom_call.1} parent=1 // pred_region
      %43 = vsyncadd [#allocation7], 0
      %s45 = sshll.u32 %s2, 4
      %s46 = int_to_ptr.hbm [resolvable:$true] %s45
      %s47 = sshll.u32 [#allocation8], 4
      %s48 = int_to_ptr.vmem [resolvable:$true] %s47
      %50 = dma.hbm_to_vmem [thread:$0]  %s46, 64, %s48, [#allocation7]
    $region13: #{tpu_custom_call.1} parent=1 // pred_fallthru
      _
    // Predicated region
    $region14: #{tpu_custom_call.1} parent=1 // pred_check
      _
    $region15: #{tpu_custom_call.1} parent=1 // pred_check_branch
      %52 = sbr.rel (0) target = $region17
    $region16: #{tpu_custom_call.1} parent=1 // pred_region
      %54 = vsyncadd [#allocation10], 0
      %s55 = sshll.u32 %s3, 4
      %s56 = int_to_ptr.hbm [resolvable:$true] %s55
      %s57 = sshll.u32 [#allocation9], 4
      %s58 = int_to_ptr.vmem [resolvable:$true] %s57
      %63 = dma.hbm_to_vmem [thread:$0]  %s56, 4096, %s58, [#allocation10], 64, 64, 4
    $region17: #{tpu_custom_call.1} parent=1 // pred_fallthru
      _
    // Predicated region
    $region18: #{tpu_custom_call.1} parent=1 // pred_check
      _
    $region19: #{tpu_custom_call.1} parent=1 // pred_check_branch
      %65 = sbr.rel (0) target = $region21
    $region20: #{tpu_custom_call.1} parent=1 // pred_region
      _
    $region21: #{tpu_custom_call.1} parent=1 // pred_fallthru
      _
    // Predicated region
    $region22: #{tpu_custom_call.1} parent=1 // pred_check
      _
    $region23: #{tpu_custom_call.1} parent=1 // pred_check_branch
      %67 = sbr.rel (0) target = $region25
    $region24: #{tpu_custom_call.1} parent=1 // pred_region
      %69 = dma.done [#allocation4], 192
    $region25: #{tpu_custom_call.1} parent=1 // pred_fallthru
      _
    // Predicated region
    $region26: #{tpu_custom_call.1} parent=1 // pred_check
      _
    $region27: #{tpu_custom_call.1} parent=1 // pred_check_branch
      %71 = sbr.rel (0) target = $region29
    $region28: #{tpu_custom_call.1} parent=1 // pred_region
      %73 = dma.done [#allocation7], 4096
    $region29: #{tpu_custom_call.1} parent=1 // pred_fallthru
      _
    // Predicated region
    $region30: #{tpu_custom_call.1} parent=1 // pred_check
      _
    $region31: #{tpu_custom_call.1} parent=1 // pred_check_branch
      %75 = sbr.rel (0) target = $region33
    $region32: #{tpu_custom_call.1} parent=1 // pred_region
      %77 = dma.done [#allocation7], 64
    $region33: #{tpu_custom_call.1} parent=1 // pred_fallthru
      _
    // Predicated region
    $region34: #{tpu_custom_call.1} parent=1 // pred_check
      _
    $region35: #{tpu_custom_call.1} parent=1 // pred_check_branch
      %79 = sbr.rel (0) target = $region37
    $region36: #{tpu_custom_call.1} parent=1 // pred_region
      %81 = dma.done [#allocation10], 4096
    $region37: #{tpu_custom_call.1} parent=1 // pred_fallthru
      _
    %v82 = vld [vmem:[#allocation3] sm:$0xf]
    %v83 = vld [vmem:[#allocation3 + $0x4] sm:$0xf]
    %v84 = vld [vmem:[#allocation3 + $0x8] sm:$0xf]
    %85 = vst [vmem:[#allocation2] sm:$0xff] 0.0
    %86 = vst [vmem:[#allocation2 + $0x8] sm:$0xff] 0.0
    %87 = vst [vmem:[#allocation2 + $0x10] sm:$0xff] 0.0
    %v88 = vld [vmem:[#allocation6] sm:$0xff]
    %v89 = vld [vmem:[#allocation6 + $0x8] sm:$0xff]
    %v90 = vld [vmem:[#allocation6 + $0x10] sm:$0xff]
    %v91 = vld [vmem:[#allocation6 + $0x18] sm:$0xff]
    %v92 = vld [vmem:[#allocation6 + $0x20] sm:$0xff]
    %v93 = vld [vmem:[#allocation6 + $0x28] sm:$0xff]
    %v94 = vld [vmem:[#allocation6 + $0x30] sm:$0xff]
    %v95 = vld [vmem:[#allocation6 + $0x38] sm:$0xff]
    %v96 = vld [vmem:[#allocation6 + $0x40] sm:$0xff]
    %v97 = vld [vmem:[#allocation6 + $0x48] sm:$0xff]
    %v98 = vld [vmem:[#allocation6 + $0x50] sm:$0xff]
    %v99 = vld [vmem:[#allocation6 + $0x58] sm:$0xff]
    %v100 = vld [vmem:[#allocation6 + $0x60] sm:$0xff]
    %v101 = vld [vmem:[#allocation6 + $0x68] sm:$0xff]
    %v102 = vld [vmem:[#allocation6 + $0x70] sm:$0xff]
    %v103 = vld [vmem:[#allocation6 + $0x78] sm:$0xff]
    %v104 = vld [vmem:[#allocation6 + $0x80] sm:$0xff]
    %v105 = vld [vmem:[#allocation6 + $0x88] sm:$0xff]
    %v106 = vld [vmem:[#allocation6 + $0x90] sm:$0xff]
    %v107 = vld [vmem:[#allocation6 + $0x98] sm:$0xff]
    %v108 = vld [vmem:[#allocation6 + $0xa0] sm:$0xff]
    %v109 = vld [vmem:[#allocation6 + $0xa8] sm:$0xff]
    %v110 = vld [vmem:[#allocation6 + $0xb0] sm:$0xff]
    %v111 = vld [vmem:[#allocation6 + $0xb8] sm:$0xff]
    %v112 = vld [vmem:[#allocation6 + $0xc0] sm:$0xff]
    %v113 = vld [vmem:[#allocation6 + $0xc8] sm:$0xff]
    %v114 = vld [vmem:[#allocation6 + $0xd0] sm:$0xff]
    %v115 = vld [vmem:[#allocation6 + $0xd8] sm:$0xff]
    %v116 = vld [vmem:[#allocation6 + $0xe0] sm:$0xff]
    %v117 = vld [vmem:[#allocation6 + $0xe8] sm:$0xff]
    %v118 = vld [vmem:[#allocation6 + $0xf0] sm:$0xff]
    %v119 = vld [vmem:[#allocation6 + $0xf8] sm:$0xff]
    %v120 = vld [vmem:[#allocation8] sm:$0xf]
    %v122 = vperm.slane %v120, 0
    %v123 = vperm.slane %v120, 1
    %v124 = vperm.slane %v120, 2
    %v125 = vperm.slane %v120, 3
    %v133 = vunpack.c.l.b16 %v82
    %v134 = vunpack.c.l.b16 %v83
    %v135 = vunpack.c.l.b16 %v84
    %v136 = vpack.c.b16 %v134, %v133
    %v137 = vpack.c.b16 %v135, %v135
    %v172 = vunpack.c.l.b16 %v88
    %v173 = vunpack.c.h.b16 %v88
    %v174 = vunpack.c.l.b16 %v89
    %v175 = vunpack.c.h.b16 %v89
    %v176 = vunpack.c.l.b16 %v90
    %v177 = vunpack.c.h.b16 %v90
    %v178 = vunpack.c.l.b16 %v91
    %v179 = vunpack.c.h.b16 %v91
    %v180 = vunpack.c.l.b16 %v92
    %v181 = vunpack.c.h.b16 %v92
    %v182 = vunpack.c.l.b16 %v93
    %v183 = vunpack.c.h.b16 %v93
    %v184 = vunpack.c.l.b16 %v94
    %v185 = vunpack.c.h.b16 %v94
    %v186 = vunpack.c.l.b16 %v95
    %v187 = vunpack.c.h.b16 %v95
    %v188 = vunpack.c.l.b16 %v96
    %v189 = vunpack.c.h.b16 %v96
    %v190 = vunpack.c.l.b16 %v97
    %v191 = vunpack.c.h.b16 %v97
    %v192 = vunpack.c.l.b16 %v98
    %v193 = vunpack.c.h.b16 %v98
    %v194 = vunpack.c.l.b16 %v99
    %v195 = vunpack.c.h.b16 %v99
    %v196 = vunpack.c.l.b16 %v100
    %v197 = vunpack.c.h.b16 %v100
    %v198 = vunpack.c.l.b16 %v101
    %v199 = vunpack.c.h.b16 %v101
    %v200 = vunpack.c.l.b16 %v102
    %v201 = vunpack.c.h.b16 %v102
    %v202 = vunpack.c.l.b16 %v103
    %v203 = vunpack.c.h.b16 %v103
    %v204 = vunpack.c.l.b16 %v104
    %v205 = vunpack.c.h.b16 %v104
    %v206 = vunpack.c.l.b16 %v105
    %v207 = vunpack.c.h.b16 %v105
    %v208 = vunpack.c.l.b16 %v106
    %v209 = vunpack.c.h.b16 %v106
    %v210 = vunpack.c.l.b16 %v107
    %v211 = vunpack.c.h.b16 %v107
    %v212 = vunpack.c.l.b16 %v108
    %v213 = vunpack.c.h.b16 %v108
    %v214 = vunpack.c.l.b16 %v109
    %v215 = vunpack.c.h.b16 %v109
    %v216 = vunpack.c.l.b16 %v110
    %v217 = vunpack.c.h.b16 %v110
    %v218 = vunpack.c.l.b16 %v111
    %v219 = vunpack.c.h.b16 %v111
    %v220 = vunpack.c.l.b16 %v112
    %v221 = vunpack.c.h.b16 %v112
    %v222 = vunpack.c.l.b16 %v113
    %v223 = vunpack.c.h.b16 %v113
    %v224 = vunpack.c.l.b16 %v114
    %v225 = vunpack.c.h.b16 %v114
    %v226 = vunpack.c.l.b16 %v115
    %v227 = vunpack.c.h.b16 %v115
    %v228 = vunpack.c.l.b16 %v116
    %v229 = vunpack.c.h.b16 %v116
    %v230 = vunpack.c.l.b16 %v117
    %v231 = vunpack.c.h.b16 %v117
    %v232 = vunpack.c.l.b16 %v118
    %v233 = vunpack.c.h.b16 %v118
    %v234 = vunpack.c.l.b16 %v119
    %v235 = vunpack.c.h.b16 %v119
    %v236 = vpack.c.b16 %v176, %v172
    %v237 = vpack.c.b16 %v177, %v173
    %v238 = vpack.c.b16 %v178, %v174
    %v239 = vpack.c.b16 %v179, %v175
    %v240 = vpack.c.b16 %v184, %v180
    %v241 = vpack.c.b16 %v185, %v181
    %v242 = vpack.c.b16 %v186, %v182
    %v243 = vpack.c.b16 %v187, %v183
    %v244 = vpack.c.b16 %v192, %v188
    %v245 = vpack.c.b16 %v193, %v189
    %v246 = vpack.c.b16 %v194, %v190
    %v247 = vpack.c.b16 %v195, %v191
    %v248 = vpack.c.b16 %v200, %v196
    %v249 = vpack.c.b16 %v201, %v197
    %v250 = vpack.c.b16 %v202, %v198
    %v251 = vpack.c.b16 %v203, %v199
    %v252 = vpack.c.b16 %v208, %v204
    %v253 = vpack.c.b16 %v209, %v205
    %v254 = vpack.c.b16 %v210, %v206
    %v255 = vpack.c.b16 %v211, %v207
    %v256 = vpack.c.b16 %v216, %v212
    %v257 = vpack.c.b16 %v217, %v213
    %v258 = vpack.c.b16 %v218, %v214
    %v259 = vpack.c.b16 %v219, %v215
    %v260 = vpack.c.b16 %v224, %v220
    %v261 = vpack.c.b16 %v225, %v221
    %v262 = vpack.c.b16 %v226, %v222
    %v263 = vpack.c.b16 %v227, %v223
    %v264 = vpack.c.b16 %v232, %v228
    %v265 = vpack.c.b16 %v233, %v229
    %v266 = vpack.c.b16 %v234, %v230
    %v267 = vpack.c.b16 %v235, %v231
    %300 = vmatpush.bf16.msra.mxu0 %v264
    %301 = vmatpush.bf16.msra.mxu0 %v260
    %302 = vmatpush.bf16.msra.mxu0 %v256
    %303 = vmatpush.bf16.msra.mxu0 %v252
    %304 = vmatpush.bf16.msra.mxu0 %v248
    %305 = vmatpush.bf16.msra.mxu0 %v244
    %306 = vmatpush.bf16.msra.mxu0 %v240
    %307 = vmatpush.bf16.msra.mxu0 %v236
    %308 = vmatmul.bf16.gmra.mxu0 %v136
    %v309 = vpop.f32.mrf.mxu0
    %v310 = vadd.f32 %v122, %v309
    %v311 = vpop.f32.mrf.mxu0
    %v312 = vadd.f32 %v122, %v311
    %313 = vmatmul.bf16.gmra.mxu0 %v137
    %v314 = vpop.f32.mrf.mxu0
    %v315 = vadd.f32 %v122, %v314
    %v316 = vpop.f32.mrf.mxu0
    %317 = vdwg.mxu0
    %318 = vmatpush.bf16.msra.mxu0 %v265
    %319 = vmatpush.bf16.msra.mxu0 %v261
    %320 = vmatpush.bf16.msra.mxu0 %v257
    %321 = vmatpush.bf16.msra.mxu0 %v253
    %322 = vmatpush.bf16.msra.mxu0 %v249
    %323 = vmatpush.bf16.msra.mxu0 %v245
    %324 = vmatpush.bf16.msra.mxu0 %v241
    %325 = vmatpush.bf16.msra.mxu0 %v237
    %326 = vmatmul.bf16.gmra.mxu0 %v136
    %v327 = vpop.f32.mrf.mxu0
    %v328 = vadd.f32 %v123, %v327
    %v329 = vpop.f32.mrf.mxu0
    %v330 = vadd.f32 %v123, %v329
    %331 = vmatmul.bf16.gmra.mxu0 %v137
    %v332 = vpop.f32.mrf.mxu0
    %v333 = vadd.f32 %v123, %v332
    %v334 = vpop.f32.mrf.mxu0
    %335 = vdwg.mxu0
    %336 = vmatpush.bf16.msra.mxu0 %v266
    %337 = vmatpush.bf16.msra.mxu0 %v262
    %338 = vmatpush.bf16.msra.mxu0 %v258
    %339 = vmatpush.bf16.msra.mxu0 %v254
    %340 = vmatpush.bf16.msra.mxu0 %v250
    %341 = vmatpush.bf16.msra.mxu0 %v246
    %342 = vmatpush.bf16.msra.mxu0 %v242
    %343 = vmatpush.bf16.msra.mxu0 %v238
    %344 = vmatmul.bf16.gmra.mxu0 %v136
    %v345 = vpop.f32.mrf.mxu0
    %v346 = vadd.f32 %v124, %v345
    %v347 = vpop.f32.mrf.mxu0
    %v348 = vadd.f32 %v124, %v347
    %349 = vmatmul.bf16.gmra.mxu0 %v137
    %v350 = vpop.f32.mrf.mxu0
    %v351 = vadd.f32 %v124, %v350
    %v352 = vpop.f32.mrf.mxu0
    %353 = vdwg.mxu0
    %354 = vmatpush.bf16.msra.mxu0 %v267
    %355 = vmatpush.bf16.msra.mxu0 %v263
    %356 = vmatpush.bf16.msra.mxu0 %v259
    %357 = vmatpush.bf16.msra.mxu0 %v255
    %358 = vmatpush.bf16.msra.mxu0 %v251
    %359 = vmatpush.bf16.msra.mxu0 %v247
    %360 = vmatpush.bf16.msra.mxu0 %v243
    %361 = vmatpush.bf16.msra.mxu0 %v239
    %362 = vmatmul.bf16.gmra.mxu0 %v136
    %v363 = vpop.f32.mrf.mxu0
    %v364 = vadd.f32 %v125, %v363
    %v365 = vpop.f32.mrf.mxu0
    %v366 = vadd.f32 %v125, %v365
    %367 = vmatmul.bf16.gmra.mxu0 %v137
    %v368 = vpop.f32.mrf.mxu0
    %v369 = vadd.f32 %v125, %v368
    %v370 = vpop.f32.mrf.mxu0
    %371 = vdwg.mxu0
    %v372 = vmul.f32 %v310, 0.5
    %v373 = vmul.f32 %v328, 0.5
    %v374 = vmul.f32 %v346, 0.5
    %v375 = vmul.f32 %v364, 0.5
    %v376 = vmul.f32 %v312, 0.5
    %v377 = vmul.f32 %v330, 0.5
    %v378 = vmul.f32 %v348, 0.5
    %v379 = vmul.f32 %v366, 0.5
    %v380 = vmul.f32 %v315, 0.5
    %v381 = vmul.f32 %v333, 0.5
    %v382 = vmul.f32 %v351, 0.5
    %v383 = vmul.f32 %v369, 0.5
    %v384 = vmul.f32 %v310, 0.7978846
    %v385 = vmul.f32 %v328, 0.7978846
    %v386 = vmul.f32 %v346, 0.7978846
    %v387 = vmul.f32 %v364, 0.7978846
    %v388 = vmul.f32 %v312, 0.7978846
    %v389 = vmul.f32 %v330, 0.7978846
    %v390 = vmul.f32 %v348, 0.7978846
    %v391 = vmul.f32 %v366, 0.7978846
    %v392 = vmul.f32 %v315, 0.7978846
    %v393 = vmul.f32 %v333, 0.7978846
    %v394 = vmul.f32 %v351, 0.7978846
    %v395 = vmul.f32 %v369, 0.7978846
    %v396 = vmul.f32 %v310, 0.044715
    %v397 = vmul.f32 %v328, 0.044715
    %v398 = vmul.f32 %v346, 0.044715
    %v399 = vmul.f32 %v364, 0.044715
    %v400 = vmul.f32 %v312, 0.044715
    %v401 = vmul.f32 %v330, 0.044715
    %v402 = vmul.f32 %v348, 0.044715
    %v403 = vmul.f32 %v366, 0.044715
    %v404 = vmul.f32 %v315, 0.044715
    %v405 = vmul.f32 %v333, 0.044715
    %v406 = vmul.f32 %v351, 0.044715
    %v407 = vmul.f32 %v369, 0.044715
    %v408 = vmul.f32 %v396, %v310
    %v409 = vmul.f32 %v397, %v328
    %v410 = vmul.f32 %v398, %v346
    %v411 = vmul.f32 %v399, %v364
    %v412 = vmul.f32 %v400, %v312
    %v413 = vmul.f32 %v401, %v330
    %v414 = vmul.f32 %v402, %v348
    %v415 = vmul.f32 %v403, %v366
    %v416 = vmul.f32 %v404, %v315
    %v417 = vmul.f32 %v405, %v333
    %v418 = vmul.f32 %v406, %v351
    %v419 = vmul.f32 %v407, %v369
    %v420 = vadd.f32 %v408, 1.0
    %v421 = vadd.f32 %v409, 1.0
    %v422 = vadd.f32 %v410, 1.0
    %v423 = vadd.f32 %v411, 1.0
    %v424 = vadd.f32 %v412, 1.0
    %v425 = vadd.f32 %v413, 1.0
    %v426 = vadd.f32 %v414, 1.0
    %v427 = vadd.f32 %v415, 1.0
    %v428 = vadd.f32 %v416, 1.0
    %v429 = vadd.f32 %v417, 1.0
    %v430 = vadd.f32 %v418, 1.0
    %v431 = vadd.f32 %v419, 1.0
    %v432 = vmul.f32 %v384, %v420
    %v433 = vmul.f32 %v385, %v421
    %v434 = vmul.f32 %v386, %v422
    %v435 = vmul.f32 %v387, %v423
    %v436 = vmul.f32 %v388, %v424
    %v437 = vmul.f32 %v389, %v425
    %v438 = vmul.f32 %v390, %v426
    %v439 = vmul.f32 %v391, %v427
    %v440 = vmul.f32 %v392, %v428
    %v441 = vmul.f32 %v393, %v429
    %v442 = vmul.f32 %v394, %v430
    %v443 = vmul.f32 %v395, %v431
    %v444 = vtanh.pop %v432
    %v445 = vtanh.pop %v433
    %v446 = vtanh.pop %v434
    %v447 = vtanh.pop %v435
    %v448 = vtanh.pop %v436
    %v449 = vtanh.pop %v437
    %v450 = vtanh.pop %v438
    %v451 = vtanh.pop %v439
    %v452 = vtanh.pop %v440
    %v453 = vtanh.pop %v441
    %v454 = vtanh.pop %v442
    %v455 = vtanh.pop %v443
    %v456 = vadd.f32 %v444, 1.0
    %v457 = vadd.f32 %v445, 1.0
    %v458 = vadd.f32 %v446, 1.0
    %v459 = vadd.f32 %v447, 1.0
    %v460 = vadd.f32 %v448, 1.0
    %v461 = vadd.f32 %v449, 1.0
    %v462 = vadd.f32 %v450, 1.0
    %v463 = vadd.f32 %v451, 1.0
    %v464 = vadd.f32 %v452, 1.0
    %v465 = vadd.f32 %v453, 1.0
    %v466 = vadd.f32 %v454, 1.0
    %v467 = vadd.f32 %v455, 1.0
    %v468 = vmul.f32 %v372, %v456
    %v469 = vmul.f32 %v373, %v457
    %v470 = vmul.f32 %v374, %v458
    %v471 = vmul.f32 %v375, %v459
    %v472 = vmul.f32 %v376, %v460
    %v473 = vmul.f32 %v377, %v461
    %v474 = vmul.f32 %v378, %v462
    %v475 = vmul.f32 %v379, %v463
    %v476 = vmul.f32 %v380, %v464
    %v477 = vmul.f32 %v381, %v465
    %v478 = vmul.f32 %v382, %v466
    %v479 = vmul.f32 %v383, %v467
    %v480 = vld [vmem:[#allocation2] sm:$0xff]
    %v481 = vld [vmem:[#allocation2 + $0x8] sm:$0xff]
    %v482 = vld [vmem:[#allocation2 + $0x10] sm:$0xff]
    %v483 = vpack.c.bf16 %v472, %v468
    %v484 = vpack.c.bf16 %v473, %v469
    %v485 = vpack.c.bf16 %v474, %v470
    %v486 = vpack.c.bf16 %v475, %v471
    %v487 = vpack.c.bf16 %v476, %v476
    %v488 = vpack.c.bf16 %v477, %v477
    %v489 = vpack.c.bf16 %v478, %v478
    %v490 = vpack.c.bf16 %v479, %v479
    %v491 = vld [vmem:[#allocation9] sm:$0xf]
    %v492 = vld [vmem:[#allocation9 + $0x4] sm:$0xf]
    %v493 = vld [vmem:[#allocation9 + $0x8] sm:$0xf]
    %v494 = vld [vmem:[#allocation9 + $0xc] sm:$0xf]
    %v495 = vld [vmem:[#allocation9 + $0x10] sm:$0xf]
    %v496 = vld [vmem:[#allocation9 + $0x14] sm:$0xf]
    %v497 = vld [vmem:[#allocation9 + $0x18] sm:$0xf]
    %v498 = vld [vmem:[#allocation9 + $0x1c] sm:$0xf]
    %v499 = vld [vmem:[#allocation9 + $0x20] sm:$0xf]
    %v500 = vld [vmem:[#allocation9 + $0x24] sm:$0xf]
    %v501 = vld [vmem:[#allocation9 + $0x28] sm:$0xf]
    %v502 = vld [vmem:[#allocation9 + $0x2c] sm:$0xf]
    %v503 = vld [vmem:[#allocation9 + $0x30] sm:$0xf]
    %v504 = vld [vmem:[#allocation9 + $0x34] sm:$0xf]
    %v505 = vld [vmem:[#allocation9 + $0x38] sm:$0xf]
    %v506 = vld [vmem:[#allocation9 + $0x3c] sm:$0xf]
    %v507 = vld [vmem:[#allocation9 + $0x40] sm:$0xf]
    %v508 = vld [vmem:[#allocation9 + $0x44] sm:$0xf]
    %v509 = vld [vmem:[#allocation9 + $0x48] sm:$0xf]
    %v510 = vld [vmem:[#allocation9 + $0x4c] sm:$0xf]
    %v511 = vld [vmem:[#allocation9 + $0x50] sm:$0xf]
    %v512 = vld [vmem:[#allocation9 + $0x54] sm:$0xf]
    %v513 = vld [vmem:[#allocation9 + $0x58] sm:$0xf]
    %v514 = vld [vmem:[#allocation9 + $0x5c] sm:$0xf]
    %v515 = vld [vmem:[#allocation9 + $0x60] sm:$0xf]
    %v516 = vld [vmem:[#allocation9 + $0x64] sm:$0xf]
    %v517 = vld [vmem:[#allocation9 + $0x68] sm:$0xf]
    %v518 = vld [vmem:[#allocation9 + $0x6c] sm:$0xf]
    %v519 = vld [vmem:[#allocation9 + $0x70] sm:$0xf]
    %v520 = vld [vmem:[#allocation9 + $0x74] sm:$0xf]
    %v521 = vld [vmem:[#allocation9 + $0x78] sm:$0xf]
    %v522 = vld [vmem:[#allocation9 + $0x7c] sm:$0xf]
    %v523 = vld [vmem:[#allocation9 + $0x80] sm:$0xf]
    %v524 = vld [vmem:[#allocation9 + $0x84] sm:$0xf]
    %v525 = vld [vmem:[#allocation9 + $0x88] sm:$0xf]
    %v526 = vld [vmem:[#allocation9 + $0x8c] sm:$0xf]
    %v527 = vld [vmem:[#allocation9 + $0x90] sm:$0xf]
    %v528 = vld [vmem:[#allocation9 + $0x94] sm:$0xf]
    %v529 = vld [vmem:[#allocation9 + $0x98] sm:$0xf]
    %v530 = vld [vmem:[#allocation9 + $0x9c] sm:$0xf]
    %v531 = vld [vmem:[#allocation9 + $0xa0] sm:$0xf]
    %v532 = vld [vmem:[#allocation9 + $0xa4] sm:$0xf]
    %v533 = vld [vmem:[#allocation9 + $0xa8] sm:$0xf]
    %v534 = vld [vmem:[#allocation9 + $0xac] sm:$0xf]
    %v535 = vld [vmem:[#allocation9 + $0xb0] sm:$0xf]
    %v536 = vld [vmem:[#allocation9 + $0xb4] sm:$0xf]
    %v537 = vld [vmem:[#allocation9 + $0xb8] sm:$0xf]
    %v538 = vld [vmem:[#allocation9 + $0xbc] sm:$0xf]
    %v539 = vld [vmem:[#allocation9 + $0xc0] sm:$0xf]
    %v540 = vld [vmem:[#allocation9 + $0xc4] sm:$0xf]
    %v541 = vld [vmem:[#allocation9 + $0xc8] sm:$0xf]
    %v542 = vld [vmem:[#allocation9 + $0xcc] sm:$0xf]
    %v543 = vld [vmem:[#allocation9 + $0xd0] sm:$0xf]
    %v544 = vld [vmem:[#allocation9 + $0xd4] sm:$0xf]
    %v545 = vld [vmem:[#allocation9 + $0xd8] sm:$0xf]
    %v546 = vld [vmem:[#allocation9 + $0xdc] sm:$0xf]
    %v547 = vld [vmem:[#allocation9 + $0xe0] sm:$0xf]
    %v548 = vld [vmem:[#allocation9 + $0xe4] sm:$0xf]
    %v549 = vld [vmem:[#allocation9 + $0xe8] sm:$0xf]
    %v550 = vld [vmem:[#allocation9 + $0xec] sm:$0xf]
    %v551 = vld [vmem:[#allocation9 + $0xf0] sm:$0xf]
    %v552 = vld [vmem:[#allocation9 + $0xf4] sm:$0xf]
    %v553 = vld [vmem:[#allocation9 + $0xf8] sm:$0xf]
    %v554 = vld [vmem:[#allocation9 + $0xfc] sm:$0xf]
    %v619 = vunpack.c.l.b16 %v491
    %v620 = vunpack.c.l.b16 %v492
    %v621 = vunpack.c.l.b16 %v493
    %v622 = vunpack.c.l.b16 %v494
    %v623 = vunpack.c.l.b16 %v495
    %v624 = vunpack.c.l.b16 %v496
    %v625 = vunpack.c.l.b16 %v497
    %v626 = vunpack.c.l.b16 %v498
    %v627 = vunpack.c.l.b16 %v499
    %v628 = vunpack.c.l.b16 %v500
    %v629 = vunpack.c.l.b16 %v501
    %v630 = vunpack.c.l.b16 %v502
    %v631 = vunpack.c.l.b16 %v503
    %v632 = vunpack.c.l.b16 %v504
    %v633 = vunpack.c.l.b16 %v505
    %v634 = vunpack.c.l.b16 %v506
    %v635 = vunpack.c.l.b16 %v507
    %v636 = vunpack.c.l.b16 %v508
    %v637 = vunpack.c.l.b16 %v509
    %v638 = vunpack.c.l.b16 %v510
    %v639 = vunpack.c.l.b16 %v511
    %v640 = vunpack.c.l.b16 %v512
    %v641 = vunpack.c.l.b16 %v513
    %v642 = vunpack.c.l.b16 %v514
    %v643 = vunpack.c.l.b16 %v515
    %v644 = vunpack.c.l.b16 %v516
    %v645 = vunpack.c.l.b16 %v517
    %v646 = vunpack.c.l.b16 %v518
    %v647 = vunpack.c.l.b16 %v519
    %v648 = vunpack.c.l.b16 %v520
    %v649 = vunpack.c.l.b16 %v521
    %v650 = vunpack.c.l.b16 %v522
    %v651 = vunpack.c.l.b16 %v523
    %v652 = vunpack.c.l.b16 %v524
    %v653 = vunpack.c.l.b16 %v525
    %v654 = vunpack.c.l.b16 %v526
    %v655 = vunpack.c.l.b16 %v527
    %v656 = vunpack.c.l.b16 %v528
    %v657 = vunpack.c.l.b16 %v529
    %v658 = vunpack.c.l.b16 %v530
    %v659 = vunpack.c.l.b16 %v531
    %v660 = vunpack.c.l.b16 %v532
    %v661 = vunpack.c.l.b16 %v533
    %v662 = vunpack.c.l.b16 %v534
    %v663 = vunpack.c.l.b16 %v535
    %v664 = vunpack.c.l.b16 %v536
    %v665 = vunpack.c.l.b16 %v537
    %v666 = vunpack.c.l.b16 %v538
    %v667 = vunpack.c.l.b16 %v539
    %v668 = vunpack.c.l.b16 %v540
    %v669 = vunpack.c.l.b16 %v541
    %v670 = vunpack.c.l.b16 %v542
    %v671 = vunpack.c.l.b16 %v543
    %v672 = vunpack.c.l.b16 %v544
    %v673 = vunpack.c.l.b16 %v545
    %v674 = vunpack.c.l.b16 %v546
    %v675 = vunpack.c.l.b16 %v547
    %v676 = vunpack.c.l.b16 %v548
    %v677 = vunpack.c.l.b16 %v549
    %v678 = vunpack.c.l.b16 %v550
    %v679 = vunpack.c.l.b16 %v551
    %v680 = vunpack.c.l.b16 %v552
    %v681 = vunpack.c.l.b16 %v553
    %v682 = vunpack.c.l.b16 %v554
    %v683 = vpack.c.b16 %v620, %v619
    %v684 = vpack.c.b16 %v622, %v621
    %v685 = vpack.c.b16 %v624, %v623
    %v686 = vpack.c.b16 %v626, %v625
    %v687 = vpack.c.b16 %v628, %v627
    %v688 = vpack.c.b16 %v630, %v629
    %v689 = vpack.c.b16 %v632, %v631
    %v690 = vpack.c.b16 %v634, %v633
    %v691 = vpack.c.b16 %v636, %v635
    %v692 = vpack.c.b16 %v638, %v637
    %v693 = vpack.c.b16 %v640, %v639
    %v694 = vpack.c.b16 %v642, %v641
    %v695 = vpack.c.b16 %v644, %v643
    %v696 = vpack.c.b16 %v646, %v645
    %v697 = vpack.c.b16 %v648, %v647
    %v698 = vpack.c.b16 %v650, %v649
    %v699 = vpack.c.b16 %v652, %v651
    %v700 = vpack.c.b16 %v654, %v653
    %v701 = vpack.c.b16 %v656, %v655
    %v702 = vpack.c.b16 %v658, %v657
    %v703 = vpack.c.b16 %v660, %v659
    %v704 = vpack.c.b16 %v662, %v661
    %v705 = vpack.c.b16 %v664, %v663
    %v706 = vpack.c.b16 %v666, %v665
    %v707 = vpack.c.b16 %v668, %v667
    %v708 = vpack.c.b16 %v670, %v669
    %v709 = vpack.c.b16 %v672, %v671
    %v710 = vpack.c.b16 %v674, %v673
    %v711 = vpack.c.b16 %v676, %v675
    %v712 = vpack.c.b16 %v678, %v677
    %v713 = vpack.c.b16 %v680, %v679
    %v714 = vpack.c.b16 %v682, %v681
    %747 = vmatpush.bf16.msra.mxu0 %v690
    %748 = vmatpush.bf16.msra.mxu0 %v689
    %749 = vmatpush.bf16.msra.mxu0 %v688
    %750 = vmatpush.bf16.msra.mxu0 %v687
    %751 = vmatpush.bf16.msra.mxu0 %v686
    %752 = vmatpush.bf16.msra.mxu0 %v685
    %753 = vmatpush.bf16.msra.mxu0 %v684
    %754 = vmatpush.bf16.msra.mxu0 %v683
    %755 = vmatmul.bf16.gmra.mxu0 %v483
    %v756 = vpop.f32.mrf.mxu0
    %v757 = vadd.f32 0.0, %v756
    %v758 = vpop.f32.mrf.mxu0
    %v759 = vadd.f32 0.0, %v758
    %760 = vmatmul.bf16.gmra.mxu0 %v487
    %v761 = vpop.f32.mrf.mxu0
    %v762 = vadd.f32 0.0, %v761
    %v763 = vpop.f32.mrf.mxu0
    %764 = vdwg.mxu0
    %765 = vmatpush.bf16.msra.mxu0 %v698
    %766 = vmatpush.bf16.msra.mxu0 %v697
    %767 = vmatpush.bf16.msra.mxu0 %v696
    %768 = vmatpush.bf16.msra.mxu0 %v695
    %769 = vmatpush.bf16.msra.mxu0 %v694
    %770 = vmatpush.bf16.msra.mxu0 %v693
    %771 = vmatpush.bf16.msra.mxu0 %v692
    %772 = vmatpush.bf16.msra.mxu0 %v691
    %773 = vmatmul.bf16.gmra.mxu0 %v484
    %v774 = vpop.f32.mrf.mxu0
    %v775 = vadd.f32 %v757, %v774
    %v776 = vpop.f32.mrf.mxu0
    %v777 = vadd.f32 %v759, %v776
    %778 = vmatmul.bf16.gmra.mxu0 %v488
    %v779 = vpop.f32.mrf.mxu0
    %v780 = vadd.f32 %v762, %v779
    %v781 = vpop.f32.mrf.mxu0
    %782 = vdwg.mxu0
    %783 = vmatpush.bf16.msra.mxu0 %v706
    %784 = vmatpush.bf16.msra.mxu0 %v705
    %785 = vmatpush.bf16.msra.mxu0 %v704
    %786 = vmatpush.bf16.msra.mxu0 %v703
    %787 = vmatpush.bf16.msra.mxu0 %v702
    %788 = vmatpush.bf16.msra.mxu0 %v701
    %789 = vmatpush.bf16.msra.mxu0 %v700
    %790 = vmatpush.bf16.msra.mxu0 %v699
    %791 = vmatmul.bf16.gmra.mxu0 %v485
    %v792 = vpop.f32.mrf.mxu0
    %v793 = vadd.f32 %v775, %v792
    %v794 = vpop.f32.mrf.mxu0
    %v795 = vadd.f32 %v777, %v794
    %796 = vmatmul.bf16.gmra.mxu0 %v489
    %v797 = vpop.f32.mrf.mxu0
    %v798 = vadd.f32 %v780, %v797
    %v799 = vpop.f32.mrf.mxu0
    %800 = vdwg.mxu0
    %801 = vmatpush.bf16.msra.mxu0 %v714
    %802 = vmatpush.bf16.msra.mxu0 %v713
    %803 = vmatpush.bf16.msra.mxu0 %v712
    %804 = vmatpush.bf16.msra.mxu0 %v711
    %805 = vmatpush.bf16.msra.mxu0 %v710
    %806 = vmatpush.bf16.msra.mxu0 %v709
    %807 = vmatpush.bf16.msra.mxu0 %v708
    %808 = vmatpush.bf16.msra.mxu0 %v707
    %809 = vmatmul.bf16.gmra.mxu0 %v486
    %v810 = vpop.f32.mrf.mxu0
    %v811 = vadd.f32 %v793, %v810
    %v812 = vpop.f32.mrf.mxu0
    %v813 = vadd.f32 %v795, %v812
    %814 = vmatmul.bf16.gmra.mxu0 %v490
    %v815 = vpop.f32.mrf.mxu0
    %v816 = vadd.f32 %v798, %v815
    %v817 = vpop.f32.mrf.mxu0
    %818 = vdwg.mxu0
    %v819 = vadd.f32 %v480, %v811
    %v820 = vadd.f32 %v481, %v813
    %v821 = vadd.f32 %v482, %v816
    %822 = vst [vmem:[#allocation2] sm:$0xff] %v819
    %823 = vst [vmem:[#allocation2 + $0x8] sm:$0xff] %v820
    %824 = vst [vmem:[#allocation2 + $0x10] sm:$0xff] %v821
    %v825 = vld [vmem:[#allocation2] sm:$0xff]
    %v826 = vld [vmem:[#allocation2 + $0x8] sm:$0xff]
    %v827 = vld [vmem:[#allocation2 + $0x10] sm:$0xff]
    %v828 = vld [vmem:[%s4] sm:$0x1]
    %v830 = vperm.slane %v828, 0
    %v832 = vadd.f32 %v825, %v830
    %v833 = vadd.f32 %v826, %v830
    %v834 = vadd.f32 %v827, %v830
    %835 = vst [vmem:[#allocation11] sm:$0xff] %v832
    %836 = vst [vmem:[#allocation11 + $0x8] sm:$0xff] %v833
    %837 = vst [vmem:[#allocation11 + $0x10] sm:$0xff] %v834
    // Predicated region
    $region38: #{tpu_custom_call.1} parent=1 // pred_check
      _
    $region39: #{tpu_custom_call.1} parent=1 // pred_check_branch
      %839 = sbr.rel (0) target = $region41
    $region40: #{tpu_custom_call.1} parent=1 // pred_region
      %841 = vsyncadd [#allocation5], 0
      %s842 = sshll.u32 [#allocation11], 4
      %s843 = int_to_ptr.vmem [resolvable:$true] %s842
      %s844 = sshll.u32 %s5, 4
      %s845 = int_to_ptr.hbm [resolvable:$true] %s844
      %850 = dma.vmem_to_hbm [thread:$0]  %s843, 384, %s845, [#allocation5], 128, 128, 8
    $region41: #{tpu_custom_call.1} parent=1 // pred_fallthru
      _
    // Predicated region
    $region42: #{tpu_custom_call.1} parent=1 // pred_check
      _
    $region43: #{tpu_custom_call.1} parent=1 // pred_check_branch
      %852 = sbr.rel (0) target = $region45
    $region44: #{tpu_custom_call.1} parent=1 // pred_region
      %854 = dma.done [#allocation5], 384
    $region45: #{tpu_custom_call.1} parent=1 // pred_fallthru
      _
    %855 = vsyncpa [#allocation4], 1
    %856 = vsyncpa [#allocation7], 1
    %857 = vsyncpa [#allocation10], 1
    %858 = vsyncpa [#allocation5], 1

</llo_original>
